<compile_context>
chip_gen: v6e
topology: v6e:2x2x1
jax: 0.10.0
libtpu: 0.0.40
codegen_flags: <defaults>
</compile_context>

<pallas_src>
import jax
import jax.numpy as jnp
from jax.experimental import pallas as pl
from jax.experimental.pallas import tpu as pltpu

H1, H2 = 128, 64  # hidden widths fixed by the module


def _round_up(n, m):
    return ((n + m - 1) // m) * m


def _cdiv(a, b):
    return (a + b - 1) // b


def _mlp_kernel_vec_out(x_ref, w1_ref, b1_ref, w2_ref, b2_ref, w3t_ref, b3_ref, ot_ref):
    """out_dim == 1: third layer on VPU (mul) + XLU (lane reduce), no N=1 matmul."""
    x = x_ref[...].astype(jnp.bfloat16)                 # f32 in HBM, cast in-kernel
    h1 = jnp.dot(x, w1_ref[...], preferred_element_type=jnp.float32) + b1_ref[...]
    h1 = jnp.maximum(h1, 0.0).astype(jnp.bfloat16)
    h2 = jnp.dot(h1, w2_ref[...], preferred_element_type=jnp.float32) + b2_ref[...]
    h2 = jnp.maximum(h2, 0.0)                           # (TB, 64) f32
    w3 = w3t_ref[...].astype(jnp.float32)               # (1, 64)
    out = jnp.sum(h2 * w3, axis=-1, keepdims=True) + b3_ref[...]   # (TB, 1) f32
    ot_ref[...] = jnp.transpose(out)                    # (1, TB) lane-dense store


def _mlp_kernel_mxu_out(x_ref, w1_ref, b1_ref, w2_ref, b2_ref, w3_ref, b3_ref, ot_ref):
    """General out_dim > 1: third layer on the MXU."""
    x = x_ref[...].astype(jnp.bfloat16)
    h1 = jnp.dot(x, w1_ref[...], preferred_element_type=jnp.float32) + b1_ref[...]
    h1 = jnp.maximum(h1, 0.0).astype(jnp.bfloat16)
    h2 = jnp.dot(h1, w2_ref[...], preferred_element_type=jnp.float32) + b2_ref[...]
    h2 = jnp.maximum(h2, 0.0).astype(jnp.bfloat16)
    out = jnp.dot(h2, w3_ref[...], preferred_element_type=jnp.float32) + b3_ref[...]
    ot_ref[...] = jnp.transpose(out)


def _choose_tile_b(B, D, out_dim, tile_b):
    """Batch tile sized from an explicit per-row VMEM budget."""
    # Per-row VMEM: double-buffered f32 x rows, f32+bf16 h1, f32+bf16 h2,
    # double-buffered f32 output columns. Weights/biases are a few KiB total.
    bytes_per_row = 2 * D * 4 + H1 * (4 + 2) + H2 * (4 + 2) + 2 * out_dim * 4
    vmem_budget = 24 << 20            # headroom under the 32 MiB scoped ceiling (v7x)
    tb_cap = max(128, (vmem_budget // bytes_per_row) // 128 * 128)
    tb_max = min(max(128, _round_up(tile_b, 128)), tb_cap)

    if B <= 1024:
        # One exact full-array tile: no (8,128) alignment issue and at this size
        # the kernel is pure launch/DMA overhead anyway.
        return B
    # >= 2 balanced, lane-aligned tiles so the "parallel" batch axis uses both
    # TensorCores on v7x and tiles stay load-balanced.
    n_tiles = max(2, _cdiv(B, tb_max))
    return _round_up(_cdiv(B, n_tiles), 128)


def mlp_forward(x, params, *, tile_b=16384):
    """x: (B, D) f32.  params = (w1, b1, w2, b2, w3, b3); weights (in, out) bf16,
    biases (1, out) f32.  Returns (B, out_dim) f32."""
    w1, b1, w2, b2, w3, b3 = params
    B, D = x.shape
    out_dim = w3.shape[1]

    tb = _choose_tile_b(B, D, out_dim, tile_b)
    # Ragged last tile: Pallas pads the grid; garbage input rows only produce
    # garbage output rows, and out-of-bounds output stores are discarded.
    num_tiles = _cdiv(B, tb)

    if out_dim == 1:
        kernel = _mlp_kernel_vec_out
        w3_arg = jnp.transpose(w3)           # (1, 64): lanes-major for VPU broadcast
        w3_shape = (1, H2)
    else:
        kernel = _mlp_kernel_mxu_out
        w3_arg = w3
        w3_shape = (H2, out_dim)

    def pinned(shape):
        # Constant index_map -> DMA'd once, VMEM-resident across grid steps.
        return pl.BlockSpec(shape, lambda i: (0, 0))

    flops = 2 * B * (D * H1 + H1 * H2 + H2 * out_dim)
    bytes_accessed = (
        B * D * 4
        + sum(int(p.size) * p.dtype.itemsize for p in params)
        + B * out_dim * 4
    )

    out_t = pl.pallas_call(
        kernel,
        out_shape=jax.ShapeDtypeStruct((out_dim, B), jnp.float32),
        grid=(num_tiles,),
        in_specs=[
            pl.BlockSpec((tb, D), lambda i: (i, 0)),   # x tile, streamed f32
            pinned((D, H1)),                           # w1
            pinned((1, H1)),                           # b1
            pinned((H1, H2)),                          # w2
            pinned((1, H2)),                           # b2
            pinned(w3_shape),                          # w3 (w3^T when out_dim==1)
            pinned((1, out_dim)),                      # b3
        ],
        out_specs=pl.BlockSpec((out_dim, tb), lambda i: (0, i)),
        compiler_params=pltpu.CompilerParams(
            dimension_semantics=("parallel",),
            vmem_limit_bytes=32 << 20,       # raise v5e's 16 MiB scoped default
        ),
        cost_estimate=pl.CostEstimate(
            flops=flops, transcendentals=0, bytes_accessed=bytes_accessed
        ),
    )(x, w1, b1, w2, b2, w3_arg, b3)

    return jnp.transpose(out_t)


def init_params(key, input_dim, output_dim):
    """Deterministic init mirroring nn.Linear's uniform(-1/sqrt(fan_in)) scale.

    Weights stored as (in, out) bf16, biases as (1, out) f32.
    """
    dims = [(input_dim, H1), (H1, H2), (H2, output_dim)]
    params = []
    for fan_in, fan_out in dims:
        kw, kb, key = jax.random.split(key, 3)
        bound = 1.0 / (fan_in ** 0.5)
        w = jax.random.uniform(kw, (fan_in, fan_out), jnp.float32, -bound, bound)
        b = jax.random.uniform(kb, (1, fan_out), jnp.float32, -bound, bound)
        params += [w.astype(jnp.bfloat16), b]
    return params


def ref_forward(x, params):
    # Pure-JAX reference with the same bf16-input / f32-accumulate numerics.
    w1, b1, w2, b2, w3, b3 = params
    h = x.astype(jnp.bfloat16).astype(jnp.float32)
    h = jnp.maximum(h @ w1.astype(jnp.float32) + b1, 0.0)
    h = h.astype(jnp.bfloat16).astype(jnp.float32)
    h = jnp.maximum(h @ w2.astype(jnp.float32) + b2, 0.0)
    return h @ w3.astype(jnp.float32) + b3


if __name__ == "__main__":
    key = jax.random.PRNGKey(0)
    kx, kp, kx2 = jax.random.split(key, 3)

    # Small, module-consistent test shape (single exact tile).
    B, input_dim, output_dim = 8, 32, 1
    x = jax.random.normal(kx, (B, input_dim), jnp.float32)
    params = init_params(kp, input_dim, output_dim)

    out = jax.block_until_ready(mlp_forward(x, params))
    ref = ref_forward(x, params)
    assert out.shape == (B, output_dim)
    assert jnp.allclose(out, ref, atol=2e-3, rtol=2e-3), float(
        jnp.max(jnp.abs(out - ref))
    )

    # Multi-tile path with a ragged last tile (exercises partial-block handling
    # and the "parallel" grid axis).
    B2 = 2500
    x2 = jax.random.normal(kx2, (B2, input_dim), jnp.float32)
    out2 = jax.block_until_ready(mlp_forward(x2, params, tile_b=1280))
    ref2 = ref_forward(x2, params)
    assert out2.shape == (B2, output_dim)
    assert jnp.allclose(out2, ref2, atol=2e-3, rtol=2e-3), float(
        jnp.max(jnp.abs(out2 - ref2))
    )

    print("KERNEL_OK")
</pallas_src>

<mosaic_0001>
module attributes {stable_mosaic.version = 11 : i64} {
  func.func @_mlp_kernel_vec_out(%arg0: i32, %arg1: memref<8x32xf32, #tpu.memory_space<vmem>>, %arg2: memref<32x128xbf16, #tpu.memory_space<vmem>>, %arg3: memref<1x128xf32, #tpu.memory_space<vmem>>, %arg4: memref<128x64xbf16, #tpu.memory_space<vmem>>, %arg5: memref<1x64xf32, #tpu.memory_space<vmem>>, %arg6: memref<1x64xbf16, #tpu.memory_space<vmem>>, %arg7: memref<1x1xf32, #tpu.memory_space<vmem>>, %arg8: memref<1x8xf32, #tpu.memory_space<vmem>>) attributes {dimension_semantics = [#tpu.dimension_semantics<parallel>], iteration_bounds = array<i64: 1>, scalar_prefetch = 0 : i64, scratch_operands = 0 : i64, tpu.core_type = #tpu.core_type<tc>, window_params = [{transform_indices = @transform_0, window_bounds = array<i64: 8, 32>}, {pipeline_mode = #tpu.pipeline_mode<synchronous>, transform_indices = @transform_1, window_bounds = array<i64: 32, 128>}, {pipeline_mode = #tpu.pipeline_mode<synchronous>, transform_indices = @transform_2, window_bounds = array<i64: 1, 128>}, {pipeline_mode = #tpu.pipeline_mode<synchronous>, transform_indices = @transform_3, window_bounds = array<i64: 128, 64>}, {pipeline_mode = #tpu.pipeline_mode<synchronous>, transform_indices = @transform_4, window_bounds = array<i64: 1, 64>}, {pipeline_mode = #tpu.pipeline_mode<synchronous>, transform_indices = @transform_5, window_bounds = array<i64: 1, 64>}, {pipeline_mode = #tpu.pipeline_mode<synchronous>, transform_indices = @transform_6, window_bounds = array<i64: 1, 1>}, {transform_indices = @transform_7, window_bounds = array<i64: 1, 8>}]} {
    %c0 = arith.constant 0 : index
    %c0_0 = arith.constant 0 : index
    %0 = vector.load %arg1[%c0, %c0_0] : memref<8x32xf32, #tpu.memory_space<vmem>>, vector<8x32xf32>
    %1 = arith.truncf %0 : vector<8x32xf32> to vector<8x32xbf16>
    %c0_1 = arith.constant 0 : index
    %c0_2 = arith.constant 0 : index
    %2 = vector.load %arg2[%c0_1, %c0_2] : memref<32x128xbf16, #tpu.memory_space<vmem>>, vector<32x128xbf16>
    %cst = arith.constant dense<0.000000e+00> : vector<8x128xf32>
    %3 = tpu.matmul %1, %2, %cst {dimension_numbers = #tpu.dot_dimension_numbers<[1], [0], [0], [1], [0, 0, 1, 1], [], []>} : vector<8x32xbf16>, vector<32x128xbf16>, vector<8x128xf32> -> vector<8x128xf32>
    %c0_3 = arith.constant 0 : index
    %c0_4 = arith.constant 0 : index
    %4 = vector.load %arg3[%c0_3, %c0_4] : memref<1x128xf32, #tpu.memory_space<vmem>>, vector<1x128xf32>
    %5 = vector.broadcast %4 : vector<1x128xf32> to vector<8x128xf32>
    %6 = arith.addf %3, %5 : vector<8x128xf32>
    %cst_5 = arith.constant 0.000000e+00 : f32
    %7 = vector.broadcast %cst_5 : f32 to vector<8x128xf32>
    %8 = arith.maximumf %6, %7 : vector<8x128xf32>
    %9 = arith.truncf %8 : vector<8x128xf32> to vector<8x128xbf16>
    %c0_6 = arith.constant 0 : index
    %c0_7 = arith.constant 0 : index
    %10 = vector.load %arg4[%c0_6, %c0_7] : memref<128x64xbf16, #tpu.memory_space<vmem>>, vector<128x64xbf16>
    %cst_8 = arith.constant dense<0.000000e+00> : vector<8x64xf32>
    %11 = tpu.matmul %9, %10, %cst_8 {dimension_numbers = #tpu.dot_dimension_numbers<[1], [0], [0], [1], [0, 0, 1, 1], [], []>} : vector<8x128xbf16>, vector<128x64xbf16>, vector<8x64xf32> -> vector<8x64xf32>
    %c0_9 = arith.constant 0 : index
    %c0_10 = arith.constant 0 : index
    %12 = vector.load %arg5[%c0_9, %c0_10] : memref<1x64xf32, #tpu.memory_space<vmem>>, vector<1x64xf32>
    %13 = vector.broadcast %12 : vector<1x64xf32> to vector<8x64xf32>
    %14 = arith.addf %11, %13 : vector<8x64xf32>
    %cst_11 = arith.constant 0.000000e+00 : f32
    %15 = vector.broadcast %cst_11 : f32 to vector<8x64xf32>
    %16 = arith.maximumf %14, %15 : vector<8x64xf32>
    %c0_12 = arith.constant 0 : index
    %c0_13 = arith.constant 0 : index
    %17 = vector.load %arg6[%c0_12, %c0_13] : memref<1x64xbf16, #tpu.memory_space<vmem>>, vector<1x64xbf16>
    %18 = arith.extf %17 : vector<1x64xbf16> to vector<1x64xf32>
    %19 = vector.broadcast %18 : vector<1x64xf32> to vector<8x64xf32>
    %20 = arith.mulf %16, %19 : vector<8x64xf32>
    %cst_14 = arith.constant dense<0.000000e+00> : vector<8xf32>
    %21 = vector.multi_reduction <add>, %20, %cst_14 [1] : vector<8x64xf32> to vector<8xf32>
    %22 = vector.shape_cast %21 : vector<8xf32> to vector<8x1xf32>
    %c0_15 = arith.constant 0 : index
    %c0_16 = arith.constant 0 : index
    %23 = vector.load %arg7[%c0_15, %c0_16] : memref<1x1xf32, #tpu.memory_space<vmem>>, vector<1x1xf32>
    %24 = vector.broadcast %23 : vector<1x1xf32> to vector<8x1xf32>
    %25 = arith.addf %22, %24 : vector<8x1xf32>
    %26 = tpu.transpose %25, [1, 0] : vector<8x1xf32> -> vector<1x8xf32>
    %c0_17 = arith.constant 0 : index
    %c0_18 = arith.constant 0 : index
    %27 = vector.load %arg8[%c0_17, %c0_18] : memref<1x8xf32, #tpu.memory_space<vmem>>, vector<1x8xf32>
    tpu.vector_store %arg8[%c0_17, %c0_18], %26 {strides = array<i32>} : memref<1x8xf32, #tpu.memory_space<vmem>>, vector<1x8xf32>,
    return
  }
  func.func @transform_0(%arg0: i32) -> (i32, i32) {
    %c0_i32 = arith.constant 0 : i32
    %c0_i32_0 = arith.constant 0 : i32
    return %arg0, %c0_i32 : i32, i32
  }
  func.func @transform_1(%arg0: i32) -> (i32, i32) {
    %c0_i32 = arith.constant 0 : i32
    %c0_i32_0 = arith.constant 0 : i32
    %c0_i32_1 = arith.constant 0 : i32
    return %c0_i32, %c0_i32_0 : i32, i32
  }
  func.func @transform_2(%arg0: i32) -> (i32, i32) {
    %c0_i32 = arith.constant 0 : i32
    %c0_i32_0 = arith.constant 0 : i32
    %c0_i32_1 = arith.constant 0 : i32
    return %c0_i32, %c0_i32_0 : i32, i32
  }
  func.func @transform_3(%arg0: i32) -> (i32, i32) {
    %c0_i32 = arith.constant 0 : i32
    %c0_i32_0 = arith.constant 0 : i32
    %c0_i32_1 = arith.constant 0 : i32
    return %c0_i32, %c0_i32_0 : i32, i32
  }
  func.func @transform_4(%arg0: i32) -> (i32, i32) {
    %c0_i32 = arith.constant 0 : i32
    %c0_i32_0 = arith.constant 0 : i32
    %c0_i32_1 = arith.constant 0 : i32
    return %c0_i32, %c0_i32_0 : i32, i32
  }
  func.func @transform_5(%arg0: i32) -> (i32, i32) {
    %c0_i32 = arith.constant 0 : i32
    %c0_i32_0 = arith.constant 0 : i32
    %c0_i32_1 = arith.constant 0 : i32
    return %c0_i32, %c0_i32_0 : i32, i32
  }
  func.func @transform_6(%arg0: i32) -> (i32, i32) {
    %c0_i32 = arith.constant 0 : i32
    %c0_i32_0 = arith.constant 0 : i32
    %c0_i32_1 = arith.constant 0 : i32
    return %c0_i32, %c0_i32_0 : i32, i32
  }
  func.func @transform_7(%arg0: i32) -> (i32, i32) {
    %c0_i32 = arith.constant 0 : i32
    %c0_i32_0 = arith.constant 0 : i32
    return %c0_i32, %arg0 : i32, i32
  }
}

</mosaic_0001>

<llo_original>
// kernel: tpu_custom_call.1
$region0: #{tpu_custom_call.1}
  #allocation0 [shape = 'u32[]', space=smem, size = 0x4, offset = 0x4, fixed_abs, tag = 'smem constant byte address 0x4 - core index']
  #allocation1 [shape = 'u32[144,128]{1,0:T(1,128)}', space=vmem, size = 0x12000, scoped, tag = 'internal scratch']
  #allocation2 [shape = 'f32[1,1]{1,0:T(1,128)S(1)}', space=vmem, size = 0x200, scoped, tag = 'scoped memory for tpu_custom_call.1']
  %s0 = inlined_call_operand.vmem [shape: f32[8,32], index: 0, kind: input, shape index: {}]
  %s1 = inlined_call_operand.vmem [shape: bf16[32,128], index: 1, kind: input, shape index: {}]
  %s2 = inlined_call_operand.vmem [shape: f32[1,128], index: 2, kind: input, shape index: {}]
  %s3 = inlined_call_operand.vmem [shape: bf16[128,64], index: 3, kind: input, shape index: {}]
  %s4 = inlined_call_operand.vmem [shape: f32[1,64], index: 4, kind: input, shape index: {}]
  %s5 = inlined_call_operand.vmem [shape: bf16[1,64], index: 5, kind: input, shape index: {}]
  %s6 = inlined_call_operand.<no memory space> [shape: f32[1,1], index: 6, kind: input, shape index: {}]
  %s7 = inlined_call_operand.hbm [shape: f32[1,8], index: 7, kind: output, shape index: {}]
  %s8 = sld [smem:[#allocation0]]
  $region38: #{tpu_custom_call.1} parent=0
    _
  %s10 = ssub.s32 1, %s8
  %s11 = scalar_select 0, %s10, %s8
  %v12 = vstv %s6
  %13 = vst [vmem:[#allocation2] sm:$0x1] %v12
  $region1: #{tpu_custom_call.1} parent=0
    #allocation3 [shape = 'u8[512]{0}', space=vmem, size = 0x400, scoped, tag = 'output window, operand 0, single buffered']
    #allocation4 [shape = 's32[1]{0}', space=sflag, size = 0x4, scoped, tag = 'scoped memory for tpu_custom_call.1']
    %14 = vsyncpa [#allocation4], 0
    // Predicated region
    $region2: #{tpu_custom_call.1} parent=1 // pred_check
      _
    $region3: #{tpu_custom_call.1} parent=1 // pred_check_branch
      %16 = sbr.rel (0) target = $region5
    $region4: #{tpu_custom_call.1} parent=1 // pred_region
      _
    $region5: #{tpu_custom_call.1} parent=1 // pred_fallthru
      _
    // Predicated region
    $region6: #{tpu_custom_call.1} parent=1 // pred_check
      _
    $region7: #{tpu_custom_call.1} parent=1 // pred_check_branch
      %18 = sbr.rel (0) target = $region9
    $region8: #{tpu_custom_call.1} parent=1 // pred_region
      _
    $region9: #{tpu_custom_call.1} parent=1 // pred_fallthru
      _
    // Predicated region
    $region10: #{tpu_custom_call.1} parent=1 // pred_check
      _
    $region11: #{tpu_custom_call.1} parent=1 // pred_check_branch
      %20 = sbr.rel (0) target = $region13
    $region12: #{tpu_custom_call.1} parent=1 // pred_region
      _
    $region13: #{tpu_custom_call.1} parent=1 // pred_fallthru
      _
    // Predicated region
    $region14: #{tpu_custom_call.1} parent=1 // pred_check
      _
    $region15: #{tpu_custom_call.1} parent=1 // pred_check_branch
      %22 = sbr.rel (0) target = $region17
    $region16: #{tpu_custom_call.1} parent=1 // pred_region
      _
    $region17: #{tpu_custom_call.1} parent=1 // pred_fallthru
      _
    // Predicated region
    $region18: #{tpu_custom_call.1} parent=1 // pred_check
      _
    $region19: #{tpu_custom_call.1} parent=1 // pred_check_branch
      %24 = sbr.rel (0) target = $region21
    $region20: #{tpu_custom_call.1} parent=1 // pred_region
      _
    $region21: #{tpu_custom_call.1} parent=1 // pred_fallthru
      _
    // Predicated region
    $region22: #{tpu_custom_call.1} parent=1 // pred_check
      _
    $region23: #{tpu_custom_call.1} parent=1 // pred_check_branch
      %26 = sbr.rel (0) target = $region25
    $region24: #{tpu_custom_call.1} parent=1 // pred_region
      _
    $region25: #{tpu_custom_call.1} parent=1 // pred_fallthru
      _
    // Predicated region
    $region26: #{tpu_custom_call.1} parent=1 // pred_check
      _
    $region27: #{tpu_custom_call.1} parent=1 // pred_check_branch
      %28 = sbr.rel (0) target = $region29
    $region28: #{tpu_custom_call.1} parent=1 // pred_region
      _
    $region29: #{tpu_custom_call.1} parent=1 // pred_fallthru
      _
    %v30 = vld [vmem:[%s0] sm:$0xff]
    %v31 = vpack.c.bf16 %v30, %v30
    %v32 = vld [vmem:[%s1] sm:$0xf]
    %v33 = vld [vmem:[%s1 + $0x4] sm:$0xf]
    %v34 = vld [vmem:[%s1 + $0x8] sm:$0xf]
    %v35 = vld [vmem:[%s1 + $0xc] sm:$0xf]
    %v36 = vld [vmem:[%s2] sm:$0x1]
    %v38 = vlaneseq
    %v39 = vshrl.u32 %v38, 7
    %v40 = vsub.s32 0, %v39
    %v41 = vrot.slane %v36, %v40
    %v47 = vunpack.c.l.b16 %v32
    %v48 = vunpack.c.l.b16 %v33
    %v49 = vunpack.c.l.b16 %v34
    %v50 = vunpack.c.l.b16 %v35
    %v51 = vpack.c.b16 %v48, %v47
    %v52 = vpack.c.b16 %v50, %v49
    %vm55 = vcmask 261120
    %v57 = vsel %vm55, %v31, 0
    %59 = vmatprep.subr.bf16.mxu0 0
    %60 = vmatpush1.bf16.msra.mxu0 0
    %61 = vmatprep.subr.bf16.mxu0 0
    %62 = vmatpush1.bf16.msra.mxu0 0
    %63 = vmatprep.subr.bf16.mxu0 0
    %64 = vmatpush1.bf16.msra.mxu0 0
    %65 = vmatprep.subr.bf16.mxu0 0
    %66 = vmatpush1.bf16.msra.mxu0 0
    %67 = vmatprep.subr.bf16.mxu0 0
    %68 = vmatpush1.bf16.msra.mxu0 0
    %69 = vmatprep.subr.bf16.mxu0 0
    %70 = vmatpush1.bf16.msra.mxu0 0
    %71 = vmatprep.subr.bf16.mxu0 0
    %72 = vmatpush1.bf16.msra.mxu0 %v52
    %73 = vmatprep.subr.bf16.mxu0 0
    %74 = vmatpush1.bf16.msra.mxu0 %v51
    %75 = vmatprep.subr.bf16.mxu0 0
    %76 = vmatpush2.bf16.msra.mxu0 0
    %77 = vmatprep.subr.bf16.mxu0 0
    %78 = vmatpush2.bf16.msra.mxu0 0
    %79 = vmatprep.subr.bf16.mxu0 0
    %80 = vmatpush2.bf16.msra.mxu0 0
    %81 = vmatprep.subr.bf16.mxu0 0
    %82 = vmatpush2.bf16.msra.mxu0 0
    %83 = vmatprep.subr.bf16.mxu0 0
    %84 = vmatpush2.bf16.msra.mxu0 0
    %85 = vmatprep.subr.bf16.mxu0 0
    %86 = vmatpush2.bf16.msra.mxu0 0
    %87 = vmatprep.subr.bf16.mxu0 0
    %88 = vmatpush2.bf16.msra.mxu0 0
    %89 = vmatprep.subr.bf16.mxu0 0
    %90 = vmatpush2.bf16.msra.mxu0 0
    %91 = vmatprep.mubr.bf16.mxu0 0
    %92 = vmatmul.mubr.bf16.gmra.mxu0 %v57
    %v93 = vpop.f32.mrf.mxu0
    %v94 = vadd.f32 %v41, %v93
    %v95 = vpop.f32.mrf.mxu0
    %v96 = vpop.f32.mrf.mxu0
    %v97 = vpop.f32.mrf.mxu0
    %98 = vdwg.mxu0
    %v99 = vmax.f32 %v94, 0.0
    %v100 = vpack.c.bf16 %v99, %v99
    %v101 = vld [vmem:[%s3] sm:$0xf]
    %v102 = vld [vmem:[%s3 + $0x4] sm:$0xf]
    %v103 = vld [vmem:[%s3 + $0x8] sm:$0xf]
    %v104 = vld [vmem:[%s3 + $0xc] sm:$0xf]
    %v105 = vld [vmem:[%s3 + $0x10] sm:$0xf]
    %v106 = vld [vmem:[%s3 + $0x14] sm:$0xf]
    %v107 = vld [vmem:[%s3 + $0x18] sm:$0xf]
    %v108 = vld [vmem:[%s3 + $0x1c] sm:$0xf]
    %v109 = vld [vmem:[%s3 + $0x20] sm:$0xf]
    %v110 = vld [vmem:[%s3 + $0x24] sm:$0xf]
    %v111 = vld [vmem:[%s3 + $0x28] sm:$0xf]
    %v112 = vld [vmem:[%s3 + $0x2c] sm:$0xf]
    %v113 = vld [vmem:[%s3 + $0x30] sm:$0xf]
    %v114 = vld [vmem:[%s3 + $0x34] sm:$0xf]
    %v115 = vld [vmem:[%s3 + $0x38] sm:$0xf]
    %v116 = vld [vmem:[%s3 + $0x3c] sm:$0xf]
    %v117 = vld [vmem:[%s4] sm:$0x1]
    %v119 = vlaneseq
    %v120 = vshrl.u32 %v119, 7
    %v121 = vsub.s32 0, %v120
    %v122 = vrot.slane %v117, %v121
    %v140 = vunpack.c.l.b16 %v101
    %v141 = vunpack.c.l.b16 %v102
    %v142 = vunpack.c.l.b16 %v103
    %v143 = vunpack.c.l.b16 %v104
    %v144 = vunpack.c.l.b16 %v105
    %v145 = vunpack.c.l.b16 %v106
    %v146 = vunpack.c.l.b16 %v107
    %v147 = vunpack.c.l.b16 %v108
    %v148 = vunpack.c.l.b16 %v109
    %v149 = vunpack.c.l.b16 %v110
    %v150 = vunpack.c.l.b16 %v111
    %v151 = vunpack.c.l.b16 %v112
    %v152 = vunpack.c.l.b16 %v113
    %v153 = vunpack.c.l.b16 %v114
    %v154 = vunpack.c.l.b16 %v115
    %v155 = vunpack.c.l.b16 %v116
    %v156 = vpack.c.b16 %v141, %v140
    %v157 = vpack.c.b16 %v143, %v142
    %v158 = vpack.c.b16 %v145, %v144
    %v159 = vpack.c.b16 %v147, %v146
    %v160 = vpack.c.b16 %v149, %v148
    %v161 = vpack.c.b16 %v151, %v150
    %v162 = vpack.c.b16 %v153, %v152
    %v163 = vpack.c.b16 %v155, %v154
    %172 = vmatprep.subr.bf16.mxu0 0
    %173 = vmatpush1.bf16.msra.mxu0 %v163
    %174 = vmatprep.subr.bf16.mxu0 0
    %175 = vmatpush1.bf16.msra.mxu0 %v162
    %176 = vmatprep.subr.bf16.mxu0 0
    %177 = vmatpush1.bf16.msra.mxu0 %v161
    %178 = vmatprep.subr.bf16.mxu0 0
    %179 = vmatpush1.bf16.msra.mxu0 %v160
    %180 = vmatprep.subr.bf16.mxu0 0
    %181 = vmatpush1.bf16.msra.mxu0 %v159
    %182 = vmatprep.subr.bf16.mxu0 0
    %183 = vmatpush1.bf16.msra.mxu0 %v158
    %184 = vmatprep.subr.bf16.mxu0 0
    %185 = vmatpush1.bf16.msra.mxu0 %v157
    %186 = vmatprep.subr.bf16.mxu0 0
    %187 = vmatpush1.bf16.msra.mxu0 %v156
    %188 = vmatprep.subr.bf16.mxu0 0
    %189 = vmatpush2.bf16.msra.mxu0 0
    %190 = vmatprep.subr.bf16.mxu0 0
    %191 = vmatpush2.bf16.msra.mxu0 0
    %192 = vmatprep.subr.bf16.mxu0 0
    %193 = vmatpush2.bf16.msra.mxu0 0
    %194 = vmatprep.subr.bf16.mxu0 0
    %195 = vmatpush2.bf16.msra.mxu0 0
    %196 = vmatprep.subr.bf16.mxu0 0
    %197 = vmatpush2.bf16.msra.mxu0 0
    %198 = vmatprep.subr.bf16.mxu0 0
    %199 = vmatpush2.bf16.msra.mxu0 0
    %200 = vmatprep.subr.bf16.mxu0 0
    %201 = vmatpush2.bf16.msra.mxu0 0
    %202 = vmatprep.subr.bf16.mxu0 0
    %203 = vmatpush2.bf16.msra.mxu0 0
    %204 = vmatprep.mubr.bf16.mxu0 0
    %205 = vmatmul.mubr.bf16.gmra.mxu0 %v100
    %v206 = vpop.f32.mrf.mxu0
    %v207 = vadd.f32 %v122, %v206
    %v208 = vpop.f32.mrf.mxu0
    %v209 = vpop.f32.mrf.mxu0
    %v210 = vpop.f32.mrf.mxu0
    %211 = vdwg.mxu0
    %v212 = vmax.f32 %v207, 0.0
    %v213 = vld [vmem:[%s5] sm:$0x1]
    %v214 = vunpack.c.l.bf16 %v213
    %v215 = vlaneseq
    %v216 = vshrl.u32 %v215, 7
    %v217 = vsub.s32 0, %v216
    %v218 = vrot.slane %v214, %v217
    %v219 = vmul.f32 %v212, %v218
    %vm220 = vcmask 523264
    %v221 = vsel %vm220, %v219, 0.0
    %222 = vadd.xlane.f32.xlu0 %v221
    %v223 = vpop.xlane.xlu0 %222
    %v224 = vld [vmem:[#allocation2] sm:$0x1]
    %v226 = vlaneseq
    %v227 = vshrl.u32 %v226, 7
    %v228 = vsub.s32 0, %v227
    %v229 = vrot.slane %v224, %v228
    %v231 = vadd.f32 %v223, %v229
    %232 = vxpose.xlu0.b32.start [1/16] %v231, 128
    %233 = vxpose.xlu0.b32.cont [2/16] 0.0, 128
    %234 = vxpose.xlu0.b32.cont [3/16] 0.0, 128
    %235 = vxpose.xlu0.b32.cont [4/16] 0.0, 128
    %236 = vxpose.xlu0.b32.cont [5/16] 0.0, 128
    %237 = vxpose.xlu0.b32.cont [6/16] 0.0, 128
    %238 = vxpose.xlu0.b32.cont [7/16] 0.0, 128
    %239 = vxpose.xlu0.b32.cont [8/16] 0.0, 128
    %240 = vxpose.xlu0.b32.cont [9/16] 0.0, 128
    %241 = vxpose.xlu0.b32.cont [10/16] 0.0, 128
    %242 = vxpose.xlu0.b32.cont [11/16] 0.0, 128
    %243 = vxpose.xlu0.b32.cont [12/16] 0.0, 128
    %244 = vxpose.xlu0.b32.cont [13/16] 0.0, 128
    %245 = vxpose.xlu0.b32.cont [14/16] 0.0, 128
    %246 = vxpose.xlu0.b32.cont [15/16] 0.0, 128
    %247 = vxpose.xlu0.b32.end [16/16] 0.0, 128
    %v248 = vpop.trf.xlu0
    %v249 = vpop.trf.xlu0
    %v250 = vpop.trf.xlu0
    %v251 = vpop.trf.xlu0
    %v252 = vpop.trf.xlu0
    %v253 = vpop.trf.xlu0
    %v254 = vpop.trf.xlu0
    %v255 = vpop.trf.xlu0
    %v256 = vpop.trf.xlu0
    %v257 = vpop.trf.xlu0
    %v258 = vpop.trf.xlu0
    %v259 = vpop.trf.xlu0
    %v260 = vpop.trf.xlu0
    %v261 = vpop.trf.xlu0
    %v262 = vpop.trf.xlu0
    %v263 = vpop.trf.xlu0
    %vm264 = vcmask 57344
    %265 = vst.msk [vmem:[#allocation3] sm:$0x1] %vm264, %v248
    // Predicated region
    $region30: #{tpu_custom_call.1} parent=1 // pred_check
      _
    $region31: #{tpu_custom_call.1} parent=1 // pred_check_branch
      %267 = sbr.rel (0) target = $region33
    $region32: #{tpu_custom_call.1} parent=1 // pred_region
      %s269 = ssub.s32 16, 16
      %270 = vsyncadd [#allocation4], %s269
      %s272 = sshll.u32 [#allocation3], 4
      %s273 = int_to_ptr.vmem [resolvable:$true] %s272
      %275 = dma.vmem_to_hbm [thread:$0]  %s273, 16, %s7, [#allocation4]
    $region33: #{tpu_custom_call.1} parent=1 // pred_fallthru
      _
    // Predicated region
    $region34: #{tpu_custom_call.1} parent=1 // pred_check
      _
    $region35: #{tpu_custom_call.1} parent=1 // pred_check_branch
      %277 = sbr.rel (0) target = $region37
    $region36: #{tpu_custom_call.1} parent=1 // pred_region
      %278 = dma.done [#allocation4], 16
    $region37: #{tpu_custom_call.1} parent=1 // pred_fallthru
      _
    %279 = vsyncpa [#allocation4], 1

</llo_original>
